<compile_context>
chip_gen: v5e
topology: v5e:2x2
jax: 0.10.0
libtpu: 0.0.40
codegen_flags: <defaults>
</compile_context>

<pallas_src>
import functools

import numpy as np

import jax
import jax.numpy as jnp
from jax.experimental import pallas as pl
from jax.experimental.pallas import tpu as pltpu


_VMEM_FOOTPRINT_BUDGET = 24 << 20   # target pipelined working-set bytes (fits all gens)
_VMEM_LIMIT_BYTES = 32 << 20        # scoped-VMEM limit (<= 64 MiB v7x physical)
_HBM_BLOCK_TARGET = 2 << 20         # ~2 MiB per input block amortizes ~0.35us/step


def _dot_sim_kernel(t1_ref, t2_ref, o_ref, *, acc_dtype):
    # Blocks are (rows, E): reduce along the lane axis (E), one result per row.
    prod = t1_ref[...].astype(acc_dtype) * t2_ref[...].astype(acc_dtype)
    o_ref[...] = jnp.sum(prod, axis=-1, keepdims=True).astype(o_ref.dtype)


def _choose_row_block(p, e, itemsize):
    """Rows per grid step: big enough for HBM roofline, small enough for VMEM."""
    e_lanes = 128 * pl.cdiv(e, 128)  # last dim lane-pads to 128 in VMEM
    # Conservative per-row VMEM bytes: 2 inputs x 2 pipeline buffers
    # (<=4 B/elem, lane padded) + 2 output buffers ((rows,1) lane-pads to 128).
    per_row_vmem = 4 * e_lanes * 4 + 2 * 128 * 4
    rows_vmem = max(8, _VMEM_FOOTPRINT_BUDGET // per_row_vmem)
    rows_hbm = max(8, _HBM_BLOCK_TARGET // max(1, e * itemsize))
    rows = max(8, 8 * (min(rows_vmem, rows_hbm) // 8))
    if p <= 8:
        return p                      # single block; block dims == array dims
    # Keep the grid >= 2 steps: shards across both v7x TensorCores and bounds
    # padding waste on the final partial block to < half the work.
    rows = min(rows, 8 * pl.cdiv(pl.cdiv(p, 2), 8))
    return max(8, rows)


def dot_product_similarity(tensor_1, tensor_2):
    """(tensor_1 * tensor_2).sum(-1), batched over all leading dims."""
    assert tensor_1.shape == tensor_2.shape, "DotProductSimilarity expects matching shapes"
    lead = tensor_1.shape[:-1]
    e = tensor_1.shape[-1] if tensor_1.ndim else 1
    p = int(np.prod(lead)) if lead else 1
    out_dtype = jnp.promote_types(tensor_1.dtype, tensor_2.dtype)

    if p == 0 or e == 0:
        return jnp.zeros(lead, dtype=out_dtype)

    acc_dtype = jnp.float32 if jnp.issubdtype(out_dtype, jnp.floating) else jnp.int32

    # Free, contiguous reshape to the natural [P, E] layout (no HBM round-trip).
    t1 = tensor_1.reshape(p, e)
    t2 = tensor_2.reshape(p, e)

    itemsize = max(jnp.dtype(tensor_1.dtype).itemsize,
                   jnp.dtype(tensor_2.dtype).itemsize)
    rows = _choose_row_block(p, e, itemsize)
    grid = (pl.cdiv(p, rows),)

    out = pl.pallas_call(
        functools.partial(_dot_sim_kernel, acc_dtype=acc_dtype),
        out_shape=jax.ShapeDtypeStruct((p, 1), out_dtype),
        grid=grid,
        in_specs=[
            pl.BlockSpec((rows, e), lambda i: (i, 0)),
            pl.BlockSpec((rows, e), lambda i: (i, 0)),
        ],
        out_specs=pl.BlockSpec((rows, 1), lambda i: (i, 0)),
        compiler_params=pltpu.CompilerParams(
            dimension_semantics=("parallel",),
            vmem_limit_bytes=_VMEM_LIMIT_BYTES),
    )(t1, t2)

    return out.reshape(lead)


if __name__ == "__main__":
    key = jax.random.PRNGKey(0)

    # Shapes consistent with how the module is used in MetaTransformer:
    # [num_links, max_paths, embedding_size] path embeddings.
    num_links, max_paths, embedding_size = 2, 10, 32
    k1, k2, k3, k4 = jax.random.split(key, 4)
    tensor_1 = jax.random.normal(
        k1, (num_links, max_paths, embedding_size), dtype=jnp.float32)
    tensor_2 = jax.random.normal(
        k2, (num_links, max_paths, embedding_size), dtype=jnp.float32)

    score = jax.block_until_ready(dot_product_similarity(tensor_1, tensor_2))
    ref = jnp.sum(tensor_1 * tensor_2, axis=-1)
    assert score.shape == ref.shape == (num_links, max_paths)
    np.testing.assert_allclose(np.asarray(score), np.asarray(ref),
                               rtol=1e-5, atol=1e-5)

    # Second check: P not a multiple of the row tile and E not a multiple of 128
    # (exercises the partial final block / boundary-masking path, grid >= 2).
    a = jax.random.normal(k3, (3, 50, 48), dtype=jnp.float32)
    b = jax.random.normal(k4, (3, 50, 48), dtype=jnp.float32)
    score2 = jax.block_until_ready(dot_product_similarity(a, b))
    ref2 = jnp.sum(a * b, axis=-1)
    np.testing.assert_allclose(np.asarray(score2), np.asarray(ref2),
                               rtol=1e-5, atol=1e-5)

    print("KERNEL_OK")
</pallas_src>

<mosaic_0001>
module attributes {stable_mosaic.version = 11 : i64} {
  func.func @_dot_sim_kernel(%arg0: i32, %arg1: memref<16x32xf32, #tpu.memory_space<vmem>>, %arg2: memref<16x32xf32, #tpu.memory_space<vmem>>, %arg3: memref<16x1xf32, #tpu.memory_space<vmem>>) attributes {dimension_semantics = [#tpu.dimension_semantics<parallel>], iteration_bounds = array<i64: 2>, scalar_prefetch = 0 : i64, scratch_operands = 0 : i64, tpu.core_type = #tpu.core_type<tc>, window_params = [{transform_indices = @transform_0, window_bounds = array<i64: 16, 32>}, {transform_indices = @transform_1, window_bounds = array<i64: 16, 32>}, {transform_indices = @transform_2, window_bounds = array<i64: 16, 1>}]} {
    %c0 = arith.constant 0 : index
    %c0_0 = arith.constant 0 : index
    %0 = vector.load %arg1[%c0, %c0_0] : memref<16x32xf32, #tpu.memory_space<vmem>>, vector<16x32xf32>
    %c0_1 = arith.constant 0 : index
    %c0_2 = arith.constant 0 : index
    %1 = vector.load %arg2[%c0_1, %c0_2] : memref<16x32xf32, #tpu.memory_space<vmem>>, vector<16x32xf32>
    %2 = arith.mulf %0, %1 : vector<16x32xf32>
    %cst = arith.constant dense<0.000000e+00> : vector<16xf32>
    %3 = vector.multi_reduction <add>, %2, %cst [1] : vector<16x32xf32> to vector<16xf32>
    %4 = vector.shape_cast %3 : vector<16xf32> to vector<16x1xf32>
    %c0_3 = arith.constant 0 : index
    %c0_4 = arith.constant 0 : index
    %5 = vector.load %arg3[%c0_3, %c0_4] : memref<16x1xf32, #tpu.memory_space<vmem>>, vector<16x1xf32>
    tpu.vector_store %arg3[%c0_3, %c0_4], %4 {strides = array<i32>} : memref<16x1xf32, #tpu.memory_space<vmem>>, vector<16x1xf32>,
    return
  }
  func.func @transform_0(%arg0: i32) -> (i32, i32) {
    %c0_i32 = arith.constant 0 : i32
    %c0_i32_0 = arith.constant 0 : i32
    return %arg0, %c0_i32 : i32, i32
  }
  func.func @transform_1(%arg0: i32) -> (i32, i32) {
    %c0_i32 = arith.constant 0 : i32
    %c0_i32_0 = arith.constant 0 : i32
    return %arg0, %c0_i32 : i32, i32
  }
  func.func @transform_2(%arg0: i32) -> (i32, i32) {
    %c0_i32 = arith.constant 0 : i32
    %c0_i32_0 = arith.constant 0 : i32
    return %arg0, %c0_i32 : i32, i32
  }
}

</mosaic_0001>

<llo_original>
// kernel: tpu_custom_call.1
$region0: #{tpu_custom_call.1}
  #allocation0 [shape = 'u32[]', space=smem, size = 0x4, offset = 0x4, fixed_abs, tag = 'smem constant byte address 0x4 - core index']
  #allocation1 [shape = 'u32[72,128]{1,0:T(1,128)}', space=vmem, size = 0x9000, scoped, tag = 'internal scratch']
  %s0 = inlined_call_operand.hbm [shape: f32[20,32], index: 0, kind: input, shape index: {}]
  %s1 = inlined_call_operand.hbm [shape: f32[20,32], index: 1, kind: input, shape index: {}]
  %s2 = inlined_call_operand.vmem [shape: f32[20,1], index: 2, kind: output, shape index: {}]
  %s3 = sld [smem:[#allocation0]]
  $region97: #{tpu_custom_call.1} parent=0
    _
  %s5 = ssub.s32 1, %s3
  %s6 = scalar_select 0, %s5, %s3
  $region1: #{tpu_custom_call.1} parent=0
    #allocation2 [shape = 'u8[16384]{0}', space=vmem, size = 0x4000, scoped, tag = 'input window, operand 0']
    #allocation3 [shape = 's32[2]{0}', space=sflag, size = 0x8, scoped, tag = 'scoped memory for tpu_custom_call.1']
    #allocation4 [shape = 'u8[16384]{0}', space=vmem, size = 0x4000, scoped, tag = 'input window, operand 1']
    #allocation5 [shape = 's32[2]{0}', space=sflag, size = 0x8, scoped, tag = 'scoped memory for tpu_custom_call.1']
    #allocation6 [shape = 'u8[16384]{0}', space=vmem, size = 0x4000, scoped, tag = 'output window, operand 0']
    %7 = vsyncpa [#allocation3], 0
    %s8 = scalar_lea.sflag [#allocation3], 1
    %9 = vsyncpa %s8, 0
    %10 = vsyncpa [#allocation5], 0
    %s11 = scalar_lea.sflag [#allocation5], 1
    %12 = vsyncpa %s11, 0
    loop: start=0, step=1, limit=4
    $region2: #{tpu_custom_call.1} parent=1 // loop_pre_header
      _
    $region3: #{tpu_custom_call.1} parent=1 // loop_header
      %s14 = sphi 0, %s18
      %p15 = scmp.ge.s32.totalorder %s14, 4
      %s24 = sphi 0, %s26
      %s27 = sphi 0, %s24
      %s28 = sphi 0, %s27
      %s44 = sphi 0, %s28
      %s50 = sphi 0, %s52
      %s53 = sphi 0, %s50
      %s54 = sphi 0, %s53
      %s70 = sphi 0, %s54
      %s76 = sphi 0, %s78
      %s79 = sphi 0, %s76
      %s80 = sphi 0, %s79
      %s96 = sphi 0, %s80
    $region4: #{tpu_custom_call.1} parent=1 // loop_header_branch
      %17 = sbr.rel (%p15) target = $region8
    $region5: #{tpu_custom_call.1} parent=1 // loop_body
      %s19 = ssub.s32 %s14, 1
      %s20 = ssub.s32 %s14, 2
      %s21 = sadd.s32 %s14, 1
      %s22 = ssub.s32 %s14, %s21
      %p23 = scmp.eq.s32.totalorder %s22, 0
      %s25 = sadd.s32 %s24, 1
      %s26 = scalar_select %p23, %s24, %s25
      %p29 = pneg %p23
      %p30 = scmp.eq.s32.totalorder %s14, 1
      %p31 = por %p29, %p30
      %p32 = scmp.ne.s32.totalorder %s24, %s27
      %p33 = scmp.eq.s32.totalorder %s14, 0
      %p34 = por %p32, %p33
      %p35 = scmp.ne.s32.totalorder %s24, %s27
      %p36 = scmp.eq.s32.totalorder %s19, 1
      %p37 = por %p35, %p36
      %p38 = scmp.ne.s32.totalorder %s27, %s28
      %p39 = scmp.eq.s32.totalorder %s19, 0
      %p40 = por %p38, %p39
      %p41 = scmp.ne.s32.totalorder %s27, %s28
      %p42 = scmp.eq.s32.totalorder %s20, 1
      %p43 = por %p41, %p42
      %p45 = scmp.ne.s32.totalorder %s28, %s44
      %p46 = scmp.eq.s32.totalorder %s20, 0
      %p47 = por %p45, %p46
      %s48 = ssub.s32 %s14, %s21
      %p49 = scmp.eq.s32.totalorder %s48, 0
      %s51 = sadd.s32 %s50, 1
      %s52 = scalar_select %p49, %s50, %s51
      %p55 = pneg %p49
      %p56 = scmp.eq.s32.totalorder %s14, 1
      %p57 = por %p55, %p56
      %p58 = scmp.ne.s32.totalorder %s50, %s53
      %p59 = scmp.eq.s32.totalorder %s14, 0
      %p60 = por %p58, %p59
      %p61 = scmp.ne.s32.totalorder %s50, %s53
      %p62 = scmp.eq.s32.totalorder %s19, 1
      %p63 = por %p61, %p62
      %p64 = scmp.ne.s32.totalorder %s53, %s54
      %p65 = scmp.eq.s32.totalorder %s19, 0
      %p66 = por %p64, %p65
      %p67 = scmp.ne.s32.totalorder %s53, %s54
      %p68 = scmp.eq.s32.totalorder %s20, 1
      %p69 = por %p67, %p68
      %p71 = scmp.ne.s32.totalorder %s54, %s70
      %p72 = scmp.eq.s32.totalorder %s20, 0
      %p73 = por %p71, %p72
      %s74 = ssub.s32 %s14, %s21
      %p75 = scmp.eq.s32.totalorder %s74, 0
      %s77 = sadd.s32 %s76, 1
      %s78 = scalar_select %p75, %s76, %s77
      %p81 = pneg %p75
      %p82 = scmp.eq.s32.totalorder %s14, 1
      %p83 = por %p81, %p82
      %p84 = scmp.ne.s32.totalorder %s76, %s79
      %p85 = scmp.eq.s32.totalorder %s14, 0
      %p86 = por %p84, %p85
      %p87 = scmp.ne.s32.totalorder %s76, %s79
      %p88 = scmp.eq.s32.totalorder %s19, 1
      %p89 = por %p87, %p88
      %p90 = scmp.ne.s32.totalorder %s79, %s80
      %p91 = scmp.eq.s32.totalorder %s19, 0
      %p92 = por %p90, %p91
      %p93 = scmp.ne.s32.totalorder %s79, %s80
      %p94 = scmp.eq.s32.totalorder %s20, 1
      %p95 = por %p93, %p94
      %p97 = scmp.ne.s32.totalorder %s80, %s96
      %p98 = scmp.eq.s32.totalorder %s20, 0
      %p99 = por %p97, %p98
      %p100 = scmp.le.s32.totalorder 1, %s14
      %p101 = scmp.lt.s32.totalorder %s14, 3
      %p102 = pnand %p100, %p101
      %p103 = pneg %p102
      // Predicated region
      $region9: #{tpu_custom_call.1} parent=5 // pred_check
        _
      $region10: #{tpu_custom_call.1} parent=5 // pred_check_branch
        %105 = sbr.rel (%p102) target = $region12
      $region11: #{tpu_custom_call.1} parent=5 // pred_region
        %s106 = ssub.s32 %s14, 1
      $region12: #{tpu_custom_call.1} parent=5 // pred_fallthru
        _
      %p107 = scmp.lt.s32.totalorder %s14, 2
      // Predicated region
      $region13: #{tpu_custom_call.1} parent=5 // pred_check
        %p108 = pneg %p107
      $region14: #{tpu_custom_call.1} parent=5 // pred_check_branch
        %110 = sbr.rel (%p108) target = $region16
      $region15: #{tpu_custom_call.1} parent=5 // pred_region
        // Predicated region
        $region17: #{tpu_custom_call.1} parent=15 // pred_check
          %p111 = pneg %p34
        $region18: #{tpu_custom_call.1} parent=15 // pred_check_branch
          %113 = sbr.rel (%p111) target = $region20
        $region19: #{tpu_custom_call.1} parent=15 // pred_region
          %s114 = sand.u32 %s24, 1
          %s115 = scalar_lea.sflag [#allocation3], %s114
          %s116 = sand.u32 %s24, 1
          %s117 = smul.addr %s116, 16
          %s118 = scalar_lea.vmem [#allocation2], %s117
          %s119 = smul.u32 2, %s14
          %s120 = ssub.s32 3, %s119
          %p121 = scmp.lt.s32.totalorder %s120, 2
          %s122 = scalar_select %p121, %s120, 2
          %s123 = smul.u32 8, %s122
          %s124 = ssub.s32 16, %s123
          %s125 = sshll.u32 %s124, 4
          %126 = vsyncadd %s115, %s125
          %p127 = scmp.ne.s32.totalorder 0, %s123
          %s128 = smul.addr %s119, 8
          %s129 = scalar_lea.hbm %s0, %s128
          %s130 = smul.u32 8, %s122
          %s131 = sshll.u32 %s129, 4
          %s132 = int_to_ptr.hbm [resolvable:$true] %s131
          %s133 = sshll.u32 %s118, 4
          %s134 = int_to_ptr.vmem [resolvable:$true] %s133
          %s135 = sshll.u32 %s130, 4
          %139 = dma.hbm_to_vmem [thread:$0]  (%p127), %s132, %s135, %s134, %s115, 128, 128, 8
        $region20: #{tpu_custom_call.1} parent=15 // pred_fallthru
          _
        // Predicated region
        $region21: #{tpu_custom_call.1} parent=15 // pred_check
          %p140 = pneg %p60
        $region22: #{tpu_custom_call.1} parent=15 // pred_check_branch
          %142 = sbr.rel (%p140) target = $region24
        $region23: #{tpu_custom_call.1} parent=15 // pred_region
          %s143 = sand.u32 %s50, 1
          %s144 = scalar_lea.sflag [#allocation5], %s143
          %s145 = sand.u32 %s50, 1
          %s146 = smul.addr %s145, 16
          %s147 = scalar_lea.vmem [#allocation4], %s146
          %s148 = smul.u32 2, %s14
          %s149 = ssub.s32 3, %s148
          %p150 = scmp.lt.s32.totalorder %s149, 2
          %s151 = scalar_select %p150, %s149, 2
          %s152 = smul.u32 8, %s151
          %s153 = ssub.s32 16, %s152
          %s154 = sshll.u32 %s153, 4
          %155 = vsyncadd %s144, %s154
          %p156 = scmp.ne.s32.totalorder 0, %s152
          %s157 = smul.addr %s148, 8
          %s158 = scalar_lea.hbm %s1, %s157
          %s159 = smul.u32 8, %s151
          %s160 = sshll.u32 %s158, 4
          %s161 = int_to_ptr.hbm [resolvable:$true] %s160
          %s162 = sshll.u32 %s147, 4
          %s163 = int_to_ptr.vmem [resolvable:$true] %s162
          %s164 = sshll.u32 %s159, 4
          %168 = dma.hbm_to_vmem [thread:$0]  (%p156), %s161, %s164, %s163, %s144, 128, 128, 8
        $region24: #{tpu_custom_call.1} parent=15 // pred_fallthru
          _
      $region16: #{tpu_custom_call.1} parent=5 // pred_fallthru
        _
      %p169 = scmp.le.s32.totalorder 1, %s14
      %p170 = scmp.lt.s32.totalorder %s14, 3
      %p171 = pnand %p169, %p170
      %p172 = pneg %p171
      // Predicated region
      $region25: #{tpu_custom_call.1} parent=5 // pred_check
        _
      $region26: #{tpu_custom_call.1} parent=5 // pred_check_branch
        %174 = sbr.rel (%p171) target = $region28
      $region27: #{tpu_custom_call.1} parent=5 // pred_region
        %s175 = ssub.s32 %s14, 1
        %s176 = sand.u32 %s27, 1
        %s177 = scalar_lea.sflag [#allocation3], %s176
        %s178 = sand.u32 %s27, 1
        %s179 = smul.addr %s178, 16
        %s180 = scalar_lea.vmem [#allocation2], %s179
        // Predicated region
        $region29: #{tpu_custom_call.1} parent=27 // pred_check
          %p181 = pneg %p40
        $region30: #{tpu_custom_call.1} parent=27 // pred_check_branch
          %183 = sbr.rel (%p181) target = $region32
        $region31: #{tpu_custom_call.1} parent=27 // pred_region
          %185 = dma.done %s177, 256
        $region32: #{tpu_custom_call.1} parent=27 // pred_fallthru
          _
        %s186 = sand.u32 %s53, 1
        %s187 = scalar_lea.sflag [#allocation5], %s186
        %s188 = sand.u32 %s53, 1
        %s189 = smul.addr %s188, 16
        %s190 = scalar_lea.vmem [#allocation4], %s189
        // Predicated region
        $region33: #{tpu_custom_call.1} parent=27 // pred_check
          %p191 = pneg %p66
        $region34: #{tpu_custom_call.1} parent=27 // pred_check_branch
          %193 = sbr.rel (%p191) target = $region36
        $region35: #{tpu_custom_call.1} parent=27 // pred_region
          %195 = dma.done %s187, 256
        $region36: #{tpu_custom_call.1} parent=27 // pred_fallthru
          _
        %s196 = sand.u32 %s27, 1
        %s197 = scalar_lea.sflag [#allocation3], %s196
        %s198 = sand.u32 %s27, 1
        %s199 = smul.addr %s198, 16
        %s200 = scalar_lea.vmem [#allocation2], %s199
        %p201 = pneg %p40
        %p202 = pneg %p37
        %s203 = sand.u32 %s53, 1
        %s204 = scalar_lea.sflag [#allocation5], %s203
        %s205 = sand.u32 %s53, 1
        %s206 = smul.addr %s205, 16
        %s207 = scalar_lea.vmem [#allocation4], %s206
        %p208 = pneg %p66
        %p209 = pneg %p63
        %p210 = pneg %p92
        %p211 = pneg %p89
        %s212 = sand.u32 %s79, 1
        %s213 = sand.u32 %s79, 1
        %s214 = smul.addr %s213, 16
        %s215 = scalar_lea.vmem [#allocation6], %s214
        %s216 = smul.u32 2, %s19
        %s217 = ssub.s32 3, %s216
        %p218 = scmp.lt.s32.totalorder %s217, 2
        %s219 = scalar_select %p218, %s217, 2
        %s220 = smul.u32 8, %s219
        %s221 = smul.u32 2, %s19
        %s222 = ssub.s32 3, %s221
        %p223 = scmp.lt.s32.totalorder %s222, 2
        %s224 = scalar_select %p223, %s222, 2
        %s225 = smul.u32 8, %s224
        %s226 = smul.u32 2, %s19
        %s227 = ssub.s32 3, %s226
        %p228 = scmp.lt.s32.totalorder %s227, 2
        %s229 = scalar_select %p228, %s227, 2
        %s230 = smul.u32 8, %s229
        %v231 = vld [vmem:[%s180] sm:$0xff]
        %v232 = vld [vmem:[%s180 + $0x8] sm:$0xff]
        %v233 = vld [vmem:[%s190] sm:$0xff]
        %v234 = vld [vmem:[%s190 + $0x8] sm:$0xff]
        %v235 = vmul.f32 %v231, %v233
        %v236 = vmul.f32 %v232, %v234
        %vm237 = vcmask 261120
        %v238 = vsel %vm237, %v235, 0.0
        %239 = vadd.xlane.f32.xlu0 %v238
        %v240 = vpop.xlane.xlu0 %239
        %v241 = vsel %vm237, %v236, 0.0
        %242 = vadd.xlane.f32.xlu0 %v241
        %v243 = vpop.xlane.xlu0 %242
        %vm244 = vcmask 7168
        %245 = vst.msk [vmem:[%s215] sm:$0xff] %vm244, %v240
        %246 = vst.msk [vmem:[%s215 + $0x8] sm:$0xff] %vm244, %v243
        %s247 = sand.u32 %s79, 1
        %s248 = sand.u32 %s79, 1
        %s249 = smul.addr %s248, 16
        %s250 = scalar_lea.vmem [#allocation6], %s249
        // Predicated region
        $region37: #{tpu_custom_call.1} parent=27 // pred_check
          %p251 = pneg %p89
        $region38: #{tpu_custom_call.1} parent=27 // pred_check_branch
          %253 = sbr.rel (%p251) target = $region40
        $region39: #{tpu_custom_call.1} parent=27 // pred_region
          %s254 = smul.u32 2, %s19
          %s255 = ssub.s32 3, %s254
          %p256 = scmp.lt.s32.totalorder %s255, 2
          %s257 = scalar_select %p256, %s255, 2
          %s258 = smul.u32 8, %s257
          %p259 = scmp.ne.s32.totalorder 0, %s258
          %s260 = smul.addr %s254, 8
          %s261 = scalar_lea.vmem %s2, %s260
          // Predicated region
          $region41: #{tpu_custom_call.1} parent=39 // pred_check
            %p262 = pneg %p259
          $region42: #{tpu_custom_call.1} parent=39 // pred_check_branch
            %264 = sbr.rel (%p262) target = $region44
          $region43: #{tpu_custom_call.1} parent=39 // pred_region
            // Predicated region
            $region45: #{tpu_custom_call.1} parent=43 // pred_check
              _
            $region46: #{tpu_custom_call.1} parent=43 // pred_check_branch
              %266 = sbr.rel (0) target = $region48
            $region47: #{tpu_custom_call.1} parent=43 // pred_region
              // Predicated region
              $region67: #{tpu_custom_call.1} parent=47 // pred_check
                _
              $region68: #{tpu_custom_call.1} parent=47 // pred_check_branch
                %318 = sbr.rel (0) target = $region70
              $region69: #{tpu_custom_call.1} parent=47 // pred_region
                %s319 = sshrl.u32 %s257, 1
                // While loop
                $region71: #{tpu_custom_call.1} parent=69 // loop_pre_header
                  _
                $region72: #{tpu_custom_call.1} parent=69 // loop_header
                  %s321 = sphi 0, %s323
                  %p322 = scmp.ge.s32.totalorder %s321, %s319
                  %s326 = sphi 0, %s335
                  %s327 = sphi %s250, %s338
                  %s328 = sphi %s261, %s339
                $region73: #{tpu_custom_call.1} parent=69 // loop_header_branch
                  %325 = sbr.rel (%p322) target = $region77
                $region74: #{tpu_custom_call.1} parent=69 // loop_body
                  %v329 = vld [vmem:[%s327] sm:$0xff]
                  %330 = vst [vmem:[%s328] sm:$0xff] %v329
                  %v331 = vld [vmem:[%s327 + $0x8] sm:$0xff]
                  %332 = vst [vmem:[%s328 + $0x8] sm:$0xff] %v331
                  %s333 = sadd.s32 1, %s326
                  %p334 = scmp.ge.s32.totalorder %s333, %s319
                  %s335 = scalar_select %p334, 0, %s333
                  %s336 = smul.u32 %s335, 16
                  %s337 = smul.u32 %s335, 16
                  %s338 = scalar_lea.vmem %s250, %s336 [#allocation6]
                  %s339 = scalar_lea.vmem %s261, %s337
                $region75: #{tpu_custom_call.1} parent=69 // loop_footer
                  %s323 = sadd.s32 %s321, 1
                $region76: #{tpu_custom_call.1} parent=69 // loop_footer_branch
                  %320 = sbr.rel target = $region72
                $region77: #{tpu_custom_call.1} parent=69 // loop_exit
                  _
                %s340 = sshrl.u32 %s257, 1
                %s341 = sand.u32 %s257, 1
                %s342 = smul.u32 %s340, 2
                %s343 = smul.u32 8, %s342
                %s344 = scalar_lea.vmem %s250, %s343 [#allocation6]
                %s345 = smul.u32 8, %s342
                %s346 = scalar_lea.vmem %s261, %s345
                // While loop
                $region78: #{tpu_custom_call.1} parent=69 // loop_pre_header
                  _
                $region79: #{tpu_custom_call.1} parent=69 // loop_header
                  %s348 = sphi 0, %s350
                  %p349 = scmp.ge.s32.totalorder %s348, %s341
                  %s353 = sphi 0, %s360
                  %s354 = sphi %s344, %s363
                  %s355 = sphi %s346, %s364
                $region80: #{tpu_custom_call.1} parent=69 // loop_header_branch
                  %352 = sbr.rel (%p349) target = $region84
                $region81: #{tpu_custom_call.1} parent=69 // loop_body
                  %v356 = vld [vmem:[%s354] sm:$0xff]
                  %357 = vst [vmem:[%s355] sm:$0xff] %v356
                  %s358 = sadd.s32 1, %s353
                  %p359 = scmp.ge.s32.totalorder %s358, %s341
                  %s360 = scalar_select %p359, 0, %s358
                  %s361 = smul.u32 %s360, 8
                  %s362 = smul.u32 %s360, 8
                  %s363 = scalar_lea.vmem %s344, %s361 [#allocation6]
                  %s364 = scalar_lea.vmem %s346, %s362
                $region82: #{tpu_custom_call.1} parent=69 // loop_footer
                  %s350 = sadd.s32 %s348, 1
                $region83: #{tpu_custom_call.1} parent=69 // loop_footer_branch
                  %347 = sbr.rel target = $region79
                $region84: #{tpu_custom_call.1} parent=69 // loop_exit
                  _
              $region70: #{tpu_custom_call.1} parent=47 // pred_fallthru
                _
              // Predicated region
              $region85: #{tpu_custom_call.1} parent=47 // pred_check
                _
              $region86: #{tpu_custom_call.1} parent=47 // pred_check_branch
                %366 = sbr.rel target = $region88
              $region87: #{tpu_custom_call.1} parent=47 // pred_region
                _
              $region88: #{tpu_custom_call.1} parent=47 // pred_fallthru
                _
            $region48: #{tpu_custom_call.1} parent=43 // pred_fallthru
              _
            // Predicated region
            $region49: #{tpu_custom_call.1} parent=43 // pred_check
              _
            $region50: #{tpu_custom_call.1} parent=43 // pred_check_branch
              %268 = sbr.rel target = $region52
            $region51: #{tpu_custom_call.1} parent=43 // pred_region
              %s270 = ssub.s32 256, 1
              %s271 = sshrl.u32 %s257, 1
              // While loop
              $region53: #{tpu_custom_call.1} parent=51 // loop_pre_header
                _
              $region54: #{tpu_custom_call.1} parent=51 // loop_header
                %s273 = sphi 0, %s275
                %p274 = scmp.ge.s32.totalorder %s273, %s271
                %s278 = sphi 0, %s287
                %s279 = sphi %s250, %s290
                %s280 = sphi %s261, %s291
              $region55: #{tpu_custom_call.1} parent=51 // loop_header_branch
                %277 = sbr.rel (%p274) target = $region59
              $region56: #{tpu_custom_call.1} parent=51 // loop_body
                %v281 = vld [vmem:[%s279] sm:%s270]
                %282 = vst [vmem:[%s280] sm:%s270] %v281
                %v283 = vld [vmem:[%s279 + $0x8] sm:%s270]
                %284 = vst [vmem:[%s280 + $0x8] sm:%s270] %v283
                %s285 = sadd.s32 1, %s278
                %p286 = scmp.ge.s32.totalorder %s285, %s271
                %s287 = scalar_select %p286, 0, %s285
                %s288 = smul.u32 %s287, 16
                %s289 = smul.u32 %s287, 16
                %s290 = scalar_lea.vmem %s250, %s288 [#allocation6]
                %s291 = scalar_lea.vmem %s261, %s289
              $region57: #{tpu_custom_call.1} parent=51 // loop_footer
                %s275 = sadd.s32 %s273, 1
              $region58: #{tpu_custom_call.1} parent=51 // loop_footer_branch
                %272 = sbr.rel target = $region54
              $region59: #{tpu_custom_call.1} parent=51 // loop_exit
                _
              %s292 = sshrl.u32 %s257, 1
              %s293 = sand.u32 %s257, 1
              %s294 = smul.u32 %s292, 2
              %s295 = smul.u32 8, %s294
              %s296 = scalar_lea.vmem %s250, %s295 [#allocation6]
              %s297 = smul.u32 8, %s294
              %s298 = scalar_lea.vmem %s261, %s297
              // While loop
              $region60: #{tpu_custom_call.1} parent=51 // loop_pre_header
                _
              $region61: #{tpu_custom_call.1} parent=51 // loop_header
                %s300 = sphi 0, %s302
                %p301 = scmp.ge.s32.totalorder %s300, %s293
                %s305 = sphi 0, %s312
                %s306 = sphi %s296, %s315
                %s307 = sphi %s298, %s316
              $region62: #{tpu_custom_call.1} parent=51 // loop_header_branch
                %304 = sbr.rel (%p301) target = $region66
              $region63: #{tpu_custom_call.1} parent=51 // loop_body
                %v308 = vld [vmem:[%s306] sm:%s270]
                %309 = vst [vmem:[%s307] sm:%s270] %v308
                %s310 = sadd.s32 1, %s305
                %p311 = scmp.ge.s32.totalorder %s310, %s293
                %s312 = scalar_select %p311, 0, %s310
                %s313 = smul.u32 %s312, 8
                %s314 = smul.u32 %s312, 8
                %s315 = scalar_lea.vmem %s296, %s313 [#allocation6]
                %s316 = scalar_lea.vmem %s298, %s314
              $region64: #{tpu_custom_call.1} parent=51 // loop_footer
                %s302 = sadd.s32 %s300, 1
              $region65: #{tpu_custom_call.1} parent=51 // loop_footer_branch
                %299 = sbr.rel target = $region61
              $region66: #{tpu_custom_call.1} parent=51 // loop_exit
                _
            $region52: #{tpu_custom_call.1} parent=43 // pred_fallthru
              _
          $region44: #{tpu_custom_call.1} parent=39 // pred_fallthru
            _
          %367 = vnop
        $region40: #{tpu_custom_call.1} parent=27 // pred_fallthru
          _
      $region28: #{tpu_custom_call.1} parent=5 // pred_fallthru
        _
      %p368 = scmp.le.s32.totalorder 2, %s14
      // Predicated region
      $region89: #{tpu_custom_call.1} parent=5 // pred_check
        %p369 = pneg %p368
      $region90: #{tpu_custom_call.1} parent=5 // pred_check_branch
        %371 = sbr.rel (%p369) target = $region92
      $region91: #{tpu_custom_call.1} parent=5 // pred_region
        %s372 = ssub.s32 %s14, 2
        // Predicated region
        $region93: #{tpu_custom_call.1} parent=91 // pred_check
          %p373 = pneg %p95
        $region94: #{tpu_custom_call.1} parent=91 // pred_check_branch
          %375 = sbr.rel (%p373) target = $region96
        $region95: #{tpu_custom_call.1} parent=91 // pred_region
          %s376 = sand.u32 %s80, 1
          %s377 = sand.u32 %s80, 1
          %s378 = smul.addr %s377, 16
          %s379 = scalar_lea.vmem [#allocation6], %s378
        $region96: #{tpu_custom_call.1} parent=91 // pred_fallthru
          _
      $region92: #{tpu_custom_call.1} parent=5 // pred_fallthru
        _
    $region6: #{tpu_custom_call.1} parent=1 // loop_footer
      %s18 = sadd.s32 1, %s14
    $region7: #{tpu_custom_call.1} parent=1 // loop_footer_branch
      %13 = sbr.rel target = $region3
    $region8: #{tpu_custom_call.1} parent=1 // loop_exit
      _
    %380 = vsyncpa [#allocation3], 1
    %s381 = scalar_lea.sflag [#allocation3], 1
    %382 = vsyncpa %s381, 1
    %383 = vsyncpa [#allocation5], 1
    %s384 = scalar_lea.sflag [#allocation5], 1
    %385 = vsyncpa %s384, 1

</llo_original>
